<compile_context>
chip_gen: v7x
topology: tpu7x:2x2x1
jax: 0.10.0
libtpu: 0.0.40
codegen_flags: <defaults>
</compile_context>

<pallas_src>
import math

import numpy as np
import jax
import jax.numpy as jnp
from jax.experimental import pallas as pl
from jax.experimental.pallas import tpu as pltpu


# ----------------------------------------------------------------------------
# Parameter construction (mirrors GaussianSmoothing.__init__) — used only for
# the reference depthwise-conv check.
# ----------------------------------------------------------------------------
def make_gaussian_kernel(channels=3, kernel_size=21, sigma=3.0, dim=2):
    ks = [kernel_size] * dim
    sg = [float(sigma)] * dim
    grids = jnp.meshgrid(
        *[jnp.arange(s, dtype=jnp.float32) for s in ks], indexing="ij"
    )
    kernel = jnp.float32(1.0)
    for size, std, mg in zip(ks, sg, grids):
        mean = (size - 1) / 2
        kernel = kernel * (
            1.0 / (std * math.sqrt(2.0 * math.pi))
            * jnp.exp(-(((mg - mean) / std) ** 2) / 2.0)
        )
    kernel = kernel / jnp.sum(kernel)
    kernel = kernel.reshape((1, 1) + kernel.shape)          # (1, 1, K, K)
    kernel = jnp.tile(kernel, (channels, 1, 1, 1))          # (C, 1, K, K)
    return kernel


# ----------------------------------------------------------------------------
# Host-side construction of the fused (reflect-pad + separable Gaussian)
# operator.  The normalized 2-D kernel is the outer product of the normalized
# 1-D kernel, and reflection padding is a linear map on rows/columns, so
#   out_c = A_v @ x_c @ A_h          (exact)
# and with row-major flattening of each (H, W) image:
#   row_vec(out_c) = row_vec(x_c) @ (A_v^T ⊗ A_h)
# ----------------------------------------------------------------------------
def _reflect(t, L):
    # nn.ReflectionPad2d index map; single fold valid because pad < L.
    if t < 0:
        t = -t
    if t >= L:
        t = 2 * (L - 1) - t
    return t


def _separable_operators_np(H, W, kernel_size, sigma):
    K = kernel_size
    p = K // 2
    kk = np.arange(K, dtype=np.float64)
    mean = (K - 1) / 2.0
    g = (1.0 / (sigma * math.sqrt(2.0 * math.pi))) * np.exp(
        -(((kk - mean) / sigma) ** 2) / 2.0
    )
    g = g / g.sum()  # normalized 1-D; its outer product == normalized 2-D kernel

    A_v = np.zeros((H, H), dtype=np.float64)  # (out_row, in_row): Y = A_v @ X
    for i in range(H):
        for k in range(K):
            A_v[i, _reflect(i + k - p, H)] += g[k]

    A_h = np.zeros((W, W), dtype=np.float64)  # (in_col, out_col): Y = X @ A_h
    for j in range(W):
        for k in range(K):
            A_h[_reflect(j + k - p, W), j] += g[k]

    return A_v, A_h


# ----------------------------------------------------------------------------
# Pallas kernel: a single lane-dense MXU matmul over all (batch, channel) rows.
# ----------------------------------------------------------------------------
def _blur_matmul_kernel(x_ref, m_ref, o_ref):
    # x_ref: (N*C, H*W)   m_ref: (H*W, H*W)   o_ref: (N*C, H*W)
    o_ref[...] = jnp.dot(
        x_ref[...], m_ref[...], preferred_element_type=jnp.float32
    ).astype(o_ref.dtype)


def gaussian_smoothing(x, kernel_size, sigma):
    """x: (N, C, H, W) -> (N, C, H, W), depthwise Gaussian blur w/ reflect pad."""
    N, C, H, W = x.shape
    p = kernel_size // 2
    assert p < H and p < W, "reflection padding requires kernel_size//2 < H, W"
    # TODO(synk): dense Kronecker operator is only sensible for small images;
    # for large H*W switch to banded separable operators tiled over the grid.
    assert H * W <= 4096, "dense Kronecker path intended for small spatial sizes"

    A_v, A_h = _separable_operators_np(H, W, kernel_size, float(sigma))
    M = jnp.asarray(np.kron(A_v.T, A_h).astype(np.float32))   # (H*W, H*W)

    NC, HW = N * C, H * W
    x_flat = x.reshape(NC, HW)  # contiguous row-major reshape (free)

    out_flat = pl.pallas_call(
        _blur_matmul_kernel,
        out_shape=jax.ShapeDtypeStruct((NC, HW), x.dtype),
        grid_spec=pltpu.PrefetchScalarGridSpec(
            num_scalar_prefetch=0,
            grid=(1,),
            in_specs=[
                pl.BlockSpec((NC, HW), lambda i: (0, 0)),   # full array block
                pl.BlockSpec((HW, HW), lambda i: (0, 0)),   # fused operator
            ],
            out_specs=pl.BlockSpec((NC, HW), lambda i: (0, 0)),
        ),
        compiler_params=pltpu.CompilerParams(
            dimension_semantics=("arbitrary",),
        ),
    )(x_flat, M)

    return out_flat.reshape(N, C, H, W)


# ----------------------------------------------------------------------------
# Reference (plain JAX, mirrors the PyTorch module) for verification
# ----------------------------------------------------------------------------
def gaussian_smoothing_ref(x, weight, kernel_size):
    p = kernel_size // 2
    xp = jnp.pad(x, ((0, 0), (0, 0), (p, p), (p, p)), mode="reflect")
    C = x.shape[1]
    return jax.lax.conv_general_dilated(
        xp, weight,
        window_strides=(1, 1), padding="VALID",
        dimension_numbers=("NCHW", "OIHW", "NCHW"),
        feature_group_count=C,
    )


if __name__ == "__main__":
    CHANNELS = 3
    KERNEL_SIZE = 21
    SIGMA = 3.0

    key = jax.random.PRNGKey(0)
    # spatial must exceed kernel_size//2 for reflection padding; use 16x16
    x = jax.random.normal(key, (2, CHANNELS, 16, 16), dtype=jnp.float32)

    out = gaussian_smoothing(x, KERNEL_SIZE, SIGMA)
    out = jax.block_until_ready(out)

    weight = make_gaussian_kernel(CHANNELS, KERNEL_SIZE, SIGMA, dim=2)
    ref = jax.block_until_ready(gaussian_smoothing_ref(x, weight, KERNEL_SIZE))

    assert out.shape == x.shape, (out.shape, x.shape)
    max_err = float(jnp.max(jnp.abs(out - ref)))
    assert max_err < 1e-3, max_err

    print("KERNEL_OK")
</pallas_src>

<mosaic_0001>
module attributes {stable_mosaic.version = 11 : i64} {
  func.func @_blur_matmul_kernel(%arg0: i32, %arg1: memref<6x256xf32, #tpu.memory_space<vmem>>, %arg2: memref<256x256xf32, #tpu.memory_space<vmem>>, %arg3: memref<6x256xf32, #tpu.memory_space<vmem>>) attributes {dimension_semantics = [#tpu.dimension_semantics<arbitrary>], iteration_bounds = array<i64: 1>, scalar_prefetch = 0 : i64, scratch_operands = 0 : i64, tpu.core_type = #tpu.core_type<tc>, window_params = [{pipeline_mode = #tpu.pipeline_mode<synchronous>, transform_indices = @transform_0, window_bounds = array<i64: 6, 256>}, {pipeline_mode = #tpu.pipeline_mode<synchronous>, transform_indices = @transform_1, window_bounds = array<i64: 256, 256>}, {pipeline_mode = #tpu.pipeline_mode<synchronous>, transform_indices = @transform_2, window_bounds = array<i64: 6, 256>}]} {
    %c0 = arith.constant 0 : index
    %c0_0 = arith.constant 0 : index
    %0 = vector.load %arg1[%c0, %c0_0] : memref<6x256xf32, #tpu.memory_space<vmem>>, vector<6x256xf32>
    %c0_1 = arith.constant 0 : index
    %c0_2 = arith.constant 0 : index
    %1 = vector.load %arg2[%c0_1, %c0_2] : memref<256x256xf32, #tpu.memory_space<vmem>>, vector<256x256xf32>
    %cst = arith.constant dense<0.000000e+00> : vector<6x256xf32>
    %2 = tpu.matmul %0, %1, %cst {dimension_numbers = #tpu.dot_dimension_numbers<[1], [0], [0], [1], [0, 0, 1, 1], [], []>} : vector<6x256xf32>, vector<256x256xf32>, vector<6x256xf32> -> vector<6x256xf32>
    %c0_3 = arith.constant 0 : index
    %c0_4 = arith.constant 0 : index
    %3 = vector.load %arg3[%c0_3, %c0_4] : memref<6x256xf32, #tpu.memory_space<vmem>>, vector<6x256xf32>
    tpu.vector_store %arg3[%c0_3, %c0_4], %2 {strides = array<i32>} : memref<6x256xf32, #tpu.memory_space<vmem>>, vector<6x256xf32>,
    return
  }
  func.func @transform_0(%arg0: i32) -> (i32, i32) {
    %c0_i32 = arith.constant 0 : i32
    %c0_i32_0 = arith.constant 0 : i32
    %c0_i32_1 = arith.constant 0 : i32
    return %c0_i32, %c0_i32_0 : i32, i32
  }
  func.func @transform_1(%arg0: i32) -> (i32, i32) {
    %c0_i32 = arith.constant 0 : i32
    %c0_i32_0 = arith.constant 0 : i32
    %c0_i32_1 = arith.constant 0 : i32
    return %c0_i32, %c0_i32_0 : i32, i32
  }
  func.func @transform_2(%arg0: i32) -> (i32, i32) {
    %c0_i32 = arith.constant 0 : i32
    %c0_i32_0 = arith.constant 0 : i32
    %c0_i32_1 = arith.constant 0 : i32
    return %c0_i32, %c0_i32_0 : i32, i32
  }
}

</mosaic_0001>

<llo_original>
// kernel: tpu_custom_call.1
$region0: #{tpu_custom_call.1}
  #allocation0 [shape = 'u32[]', space=smem, size = 0x4, offset = 0x4, fixed_abs, tag = 'smem constant byte address 0x4 - core index']
  #allocation1 [shape = 'u32[144,128]{1,0:T(1,128)}', space=vmem, size = 0x12000, scoped, tag = 'internal scratch']
  %s0 = inlined_call_operand.hbm [shape: f32[6,256], index: 0, kind: input, shape index: {}]
  %s1 = inlined_call_operand.hbm [shape: f32[256,256], index: 1, kind: input, shape index: {}]
  %s2 = inlined_call_operand.hbm [shape: f32[6,256], index: 2, kind: output, shape index: {}]
  %s3 = sld [smem:[#allocation0]]
  $region26: #{tpu_custom_call.1} parent=0
    _
  %s5 = ssub.s32 1, %s3
  %s6 = scalar_select 0, %s5, %s3
  $region1: #{tpu_custom_call.1} parent=0
    #allocation2 [shape = 'u8[8192]{0}', space=vmem, size = 0x2000, scoped, tag = 'input window, operand 0, single buffered']
    #allocation3 [shape = 's32[1]{0}', space=sflag, size = 0x4, scoped, tag = 'scoped memory for tpu_custom_call.1']
    #allocation4 [shape = 's32[1]{0}', space=sflag, size = 0x4, scoped, tag = 'scoped memory for tpu_custom_call.1']
    #allocation5 [shape = 'u8[262144]{0}', space=vmem, size = 0x40000, scoped, tag = 'input window, operand 1, single buffered']
    #allocation6 [shape = 's32[1]{0}', space=sflag, size = 0x4, scoped, tag = 'scoped memory for tpu_custom_call.1']
    #allocation7 [shape = 'u8[8192]{0}', space=vmem, size = 0x2000, scoped, tag = 'output window, operand 0, single buffered']
    %7 = vsyncpa [#allocation3], 0
    %8 = vsyncpa [#allocation6], 0
    %9 = vsyncpa [#allocation4], 0
    // Predicated region
    $region2: #{tpu_custom_call.1} parent=1 // pred_check
      _
    $region3: #{tpu_custom_call.1} parent=1 // pred_check_branch
      %11 = sbr.rel (0) target = $region5
    $region4: #{tpu_custom_call.1} parent=1 // pred_region
      %s13 = ssub.s32 256, 256
      %14 = vsyncadd [#allocation3], %s13
      %s16 = sshll.u32 [#allocation2], 4
      %s17 = int_to_ptr.vmem [resolvable:$true] %s16
      %19 = dma.hbm_to_vmem [thread:$0]  %s0, 256, %s17, [#allocation3]
    $region5: #{tpu_custom_call.1} parent=1 // pred_fallthru
      _
    // Predicated region
    $region6: #{tpu_custom_call.1} parent=1 // pred_check
      _
    $region7: #{tpu_custom_call.1} parent=1 // pred_check_branch
      %21 = sbr.rel (0) target = $region9
    $region8: #{tpu_custom_call.1} parent=1 // pred_region
      %s23 = ssub.s32 8192, 8192
      %24 = vsyncadd [#allocation6], %s23
      %s25 = sshll.u32 [#allocation5], 4
      %s26 = int_to_ptr.vmem [resolvable:$true] %s25
      %31 = dma.hbm_to_vmem [thread:$0]  %s1, 8192, %s26, [#allocation6], 256, 256, 16
    $region9: #{tpu_custom_call.1} parent=1 // pred_fallthru
      _
    // Predicated region
    $region10: #{tpu_custom_call.1} parent=1 // pred_check
      _
    $region11: #{tpu_custom_call.1} parent=1 // pred_check_branch
      %33 = sbr.rel (0) target = $region13
    $region12: #{tpu_custom_call.1} parent=1 // pred_region
      %34 = dma.done [#allocation3], 256
    $region13: #{tpu_custom_call.1} parent=1 // pred_fallthru
      _
    // Predicated region
    $region14: #{tpu_custom_call.1} parent=1 // pred_check
      _
    $region15: #{tpu_custom_call.1} parent=1 // pred_check_branch
      %36 = sbr.rel (0) target = $region17
    $region16: #{tpu_custom_call.1} parent=1 // pred_region
      %37 = dma.done [#allocation6], 8192
    $region17: #{tpu_custom_call.1} parent=1 // pred_fallthru
      _
    %v38 = vld [vmem:[#allocation2] sm:$0x3f]
    %v39 = vld [vmem:[#allocation2 + $0x8] sm:$0x3f]
    %v40 = vld [vmem:[#allocation5] sm:$0xff]
    %v41 = vld [vmem:[#allocation5 + $0x8] sm:$0xff]
    %v42 = vld [vmem:[#allocation5 + $0x10] sm:$0xff]
    %v43 = vld [vmem:[#allocation5 + $0x18] sm:$0xff]
    %v44 = vld [vmem:[#allocation5 + $0x20] sm:$0xff]
    %v45 = vld [vmem:[#allocation5 + $0x28] sm:$0xff]
    %v46 = vld [vmem:[#allocation5 + $0x30] sm:$0xff]
    %v47 = vld [vmem:[#allocation5 + $0x38] sm:$0xff]
    %v48 = vld [vmem:[#allocation5 + $0x40] sm:$0xff]
    %v49 = vld [vmem:[#allocation5 + $0x48] sm:$0xff]
    %v50 = vld [vmem:[#allocation5 + $0x50] sm:$0xff]
    %v51 = vld [vmem:[#allocation5 + $0x58] sm:$0xff]
    %v52 = vld [vmem:[#allocation5 + $0x60] sm:$0xff]
    %v53 = vld [vmem:[#allocation5 + $0x68] sm:$0xff]
    %v54 = vld [vmem:[#allocation5 + $0x70] sm:$0xff]
    %v55 = vld [vmem:[#allocation5 + $0x78] sm:$0xff]
    %v56 = vld [vmem:[#allocation5 + $0x80] sm:$0xff]
    %v57 = vld [vmem:[#allocation5 + $0x88] sm:$0xff]
    %v58 = vld [vmem:[#allocation5 + $0x90] sm:$0xff]
    %v59 = vld [vmem:[#allocation5 + $0x98] sm:$0xff]
    %v60 = vld [vmem:[#allocation5 + $0xa0] sm:$0xff]
    %v61 = vld [vmem:[#allocation5 + $0xa8] sm:$0xff]
    %v62 = vld [vmem:[#allocation5 + $0xb0] sm:$0xff]
    %v63 = vld [vmem:[#allocation5 + $0xb8] sm:$0xff]
    %v64 = vld [vmem:[#allocation5 + $0xc0] sm:$0xff]
    %v65 = vld [vmem:[#allocation5 + $0xc8] sm:$0xff]
    %v66 = vld [vmem:[#allocation5 + $0xd0] sm:$0xff]
    %v67 = vld [vmem:[#allocation5 + $0xd8] sm:$0xff]
    %v68 = vld [vmem:[#allocation5 + $0xe0] sm:$0xff]
    %v69 = vld [vmem:[#allocation5 + $0xe8] sm:$0xff]
    %v70 = vld [vmem:[#allocation5 + $0xf0] sm:$0xff]
    %v71 = vld [vmem:[#allocation5 + $0xf8] sm:$0xff]
    %v72 = vld [vmem:[#allocation5 + $0x100] sm:$0xff]
    %v73 = vld [vmem:[#allocation5 + $0x108] sm:$0xff]
    %v74 = vld [vmem:[#allocation5 + $0x110] sm:$0xff]
    %v75 = vld [vmem:[#allocation5 + $0x118] sm:$0xff]
    %v76 = vld [vmem:[#allocation5 + $0x120] sm:$0xff]
    %v77 = vld [vmem:[#allocation5 + $0x128] sm:$0xff]
    %v78 = vld [vmem:[#allocation5 + $0x130] sm:$0xff]
    %v79 = vld [vmem:[#allocation5 + $0x138] sm:$0xff]
    %v80 = vld [vmem:[#allocation5 + $0x140] sm:$0xff]
    %v81 = vld [vmem:[#allocation5 + $0x148] sm:$0xff]
    %v82 = vld [vmem:[#allocation5 + $0x150] sm:$0xff]
    %v83 = vld [vmem:[#allocation5 + $0x158] sm:$0xff]
    %v84 = vld [vmem:[#allocation5 + $0x160] sm:$0xff]
    %v85 = vld [vmem:[#allocation5 + $0x168] sm:$0xff]
    %v86 = vld [vmem:[#allocation5 + $0x170] sm:$0xff]
    %v87 = vld [vmem:[#allocation5 + $0x178] sm:$0xff]
    %v88 = vld [vmem:[#allocation5 + $0x180] sm:$0xff]
    %v89 = vld [vmem:[#allocation5 + $0x188] sm:$0xff]
    %v90 = vld [vmem:[#allocation5 + $0x190] sm:$0xff]
    %v91 = vld [vmem:[#allocation5 + $0x198] sm:$0xff]
    %v92 = vld [vmem:[#allocation5 + $0x1a0] sm:$0xff]
    %v93 = vld [vmem:[#allocation5 + $0x1a8] sm:$0xff]
    %v94 = vld [vmem:[#allocation5 + $0x1b0] sm:$0xff]
    %v95 = vld [vmem:[#allocation5 + $0x1b8] sm:$0xff]
    %v96 = vld [vmem:[#allocation5 + $0x1c0] sm:$0xff]
    %v97 = vld [vmem:[#allocation5 + $0x1c8] sm:$0xff]
    %v98 = vld [vmem:[#allocation5 + $0x1d0] sm:$0xff]
    %v99 = vld [vmem:[#allocation5 + $0x1d8] sm:$0xff]
    %v100 = vld [vmem:[#allocation5 + $0x1e0] sm:$0xff]
    %v101 = vld [vmem:[#allocation5 + $0x1e8] sm:$0xff]
    %v102 = vld [vmem:[#allocation5 + $0x1f0] sm:$0xff]
    %v103 = vld [vmem:[#allocation5 + $0x1f8] sm:$0xff]
    %104 = vmatprep.subr.mxu0 %v41
    %105 = vmatpush1.msra.mxu0 %v40
    %106 = vmatprep.subr.mxu0 %v43
    %107 = vmatpush1.msra.mxu0 %v42
    %108 = vmatprep.subr.mxu0 %v45
    %109 = vmatpush1.msra.mxu0 %v44
    %110 = vmatprep.subr.mxu0 %v47
    %111 = vmatpush1.msra.mxu0 %v46
    %112 = vmatprep.subr.mxu0 %v49
    %113 = vmatpush1.msra.mxu0 %v48
    %114 = vmatprep.subr.mxu0 %v51
    %115 = vmatpush1.msra.mxu0 %v50
    %116 = vmatprep.subr.mxu0 %v53
    %117 = vmatpush1.msra.mxu0 %v52
    %118 = vmatprep.subr.mxu0 %v55
    %119 = vmatpush1.msra.mxu0 %v54
    %120 = vmatprep.subr.mxu0 %v57
    %121 = vmatpush1.msra.mxu0 %v56
    %122 = vmatprep.subr.mxu0 %v59
    %123 = vmatpush1.msra.mxu0 %v58
    %124 = vmatprep.subr.mxu0 %v61
    %125 = vmatpush1.msra.mxu0 %v60
    %126 = vmatprep.subr.mxu0 %v63
    %127 = vmatpush1.msra.mxu0 %v62
    %128 = vmatprep.subr.mxu0 %v65
    %129 = vmatpush1.msra.mxu0 %v64
    %130 = vmatprep.subr.mxu0 %v67
    %131 = vmatpush1.msra.mxu0 %v66
    %132 = vmatprep.subr.mxu0 %v69
    %133 = vmatpush1.msra.mxu0 %v68
    %134 = vmatprep.subr.mxu0 %v71
    %135 = vmatpush1.msra.mxu0 %v70
    %136 = vmatprep.subr.mxu0 %v73
    %137 = vmatpush1.msra.mxu0 %v72
    %138 = vmatprep.subr.mxu0 %v75
    %139 = vmatpush1.msra.mxu0 %v74
    %140 = vmatprep.subr.mxu0 %v77
    %141 = vmatpush1.msra.mxu0 %v76
    %142 = vmatprep.subr.mxu0 %v79
    %143 = vmatpush1.msra.mxu0 %v78
    %144 = vmatprep.subr.mxu0 %v81
    %145 = vmatpush1.msra.mxu0 %v80
    %146 = vmatprep.subr.mxu0 %v83
    %147 = vmatpush1.msra.mxu0 %v82
    %148 = vmatprep.subr.mxu0 %v85
    %149 = vmatpush1.msra.mxu0 %v84
    %150 = vmatprep.subr.mxu0 %v87
    %151 = vmatpush1.msra.mxu0 %v86
    %152 = vmatprep.subr.mxu0 %v89
    %153 = vmatpush1.msra.mxu0 %v88
    %154 = vmatprep.subr.mxu0 %v91
    %155 = vmatpush1.msra.mxu0 %v90
    %156 = vmatprep.subr.mxu0 %v93
    %157 = vmatpush1.msra.mxu0 %v92
    %158 = vmatprep.subr.mxu0 %v95
    %159 = vmatpush1.msra.mxu0 %v94
    %160 = vmatprep.subr.mxu0 %v97
    %161 = vmatpush1.msra.mxu0 %v96
    %162 = vmatprep.subr.mxu0 %v99
    %163 = vmatpush1.msra.mxu0 %v98
    %164 = vmatprep.subr.mxu0 %v101
    %165 = vmatpush1.msra.mxu0 %v100
    %166 = vmatprep.subr.mxu0 %v103
    %167 = vmatpush1.msra.mxu0 %v102
    %168 = vmatprep.mubr.f32.mxu0 %v39
    %169 = vmatmul.mubr.f32.gmra.mrb[0].mxu0 %v38
    %v170 = vpop.f32.mrb[0].mxu0
    %v171 = vadd.f32 0.0, %v170
    %v172 = vpop.f32.mrb[0].mxu0
    %v173 = vadd.f32 0.0, %v172
    %174 = vdwg.mxu0
    %175 = vst [vmem:[#allocation7] sm:$0x3f] %v171
    %176 = vst [vmem:[#allocation7 + $0x8] sm:$0x3f] %v173
    // Predicated region
    $region18: #{tpu_custom_call.1} parent=1 // pred_check
      _
    $region19: #{tpu_custom_call.1} parent=1 // pred_check_branch
      %178 = sbr.rel (0) target = $region21
    $region20: #{tpu_custom_call.1} parent=1 // pred_region
      %s180 = ssub.s32 256, 256
      %181 = vsyncadd [#allocation4], %s180
      %s183 = sshll.u32 [#allocation7], 4
      %s184 = int_to_ptr.vmem [resolvable:$true] %s183
      %186 = dma.vmem_to_hbm [thread:$0]  %s184, 256, %s2, [#allocation4]
    $region21: #{tpu_custom_call.1} parent=1 // pred_fallthru
      _
    // Predicated region
    $region22: #{tpu_custom_call.1} parent=1 // pred_check
      _
    $region23: #{tpu_custom_call.1} parent=1 // pred_check_branch
      %188 = sbr.rel (0) target = $region25
    $region24: #{tpu_custom_call.1} parent=1 // pred_region
      %189 = dma.done [#allocation4], 256
    $region25: #{tpu_custom_call.1} parent=1 // pred_fallthru
      _
    %190 = vsyncpa [#allocation3], 1
    %191 = vsyncpa [#allocation6], 1
    %192 = vsyncpa [#allocation4], 1

</llo_original>
